<compile_context>
chip_gen: v6e
topology: v6e:2x2x1
jax: 0.10.0
libtpu: 0.0.40
codegen_flags: <defaults>
</compile_context>

<pallas_src>
import jax
import jax.numpy as jnp
from jax import lax
from jax.experimental import pallas as pl
from jax.experimental.pallas import tpu as pltpu


_DIMNUMS = (((1,), (1,)), ((), ()))  # contract feature dim of x[B,F] and W[C,F]


# -----------------------------------------------------------------------------
# Kernels.  Scales are already folded into w / b by prepare_params(), so the
# epilogue is just "+ bias" (done via the accumulator init at k == 0).
# -----------------------------------------------------------------------------
def _single_step_kernel(x_ref, w_ref, b_ref, o_ref):
    """Whole reduction in one grid step: fused trans-B matmul + bias."""
    acc = lax.dot_general(
        x_ref[...], w_ref[...],
        dimension_numbers=_DIMNUMS,
        preferred_element_type=jnp.float32,
    )
    o_ref[...] = (acc + b_ref[...]).astype(o_ref.dtype)


def _multi_step_kernel_f32(x_ref, w_ref, b_ref, o_ref):
    """K-tiled reduction accumulating directly into the (f32) output block."""
    k = pl.program_id(2)

    @pl.when(k == 0)
    def _():
        o_ref[...] = jnp.broadcast_to(b_ref[...], o_ref.shape)

    o_ref[...] += lax.dot_general(
        x_ref[...], w_ref[...],
        dimension_numbers=_DIMNUMS,
        preferred_element_type=jnp.float32,
    )


def _multi_step_kernel_acc(x_ref, w_ref, b_ref, o_ref, acc_ref):
    """K-tiled reduction with an f32 scratch accumulator (low-precision out)."""
    k = pl.program_id(2)

    @pl.when(k == 0)
    def _():
        acc_ref[...] = jnp.broadcast_to(b_ref[...], acc_ref.shape)

    acc_ref[...] += lax.dot_general(
        x_ref[...], w_ref[...],
        dimension_numbers=_DIMNUMS,
        preferred_element_type=jnp.float32,
    )

    @pl.when(k == pl.num_programs(2) - 1)
    def _():
        o_ref[...] = acc_ref[...].astype(o_ref.dtype)


# -----------------------------------------------------------------------------
# Generation-aware tile caps / VMEM budget.
# -----------------------------------------------------------------------------
def _hw_budget():
    """(tm_cap, tn_cap, tk_cap, vmem_limit_bytes), derived from physical VMEM."""
    try:
        cap = getattr(pltpu.get_tpu_info(), "vmem_capacity_bytes", None)
    except Exception:
        cap = None
    if cap is None:
        cap = 64 * 1024 * 1024                 # conservative (v7x-sized) assumption
    if cap >= 100 * 1024 * 1024:               # v5e / v6e: 128 MiB physical VMEM
        return 512, 1024, 2048, 96 * 1024 * 1024
    return 256, 512, 2048, 48 * 1024 * 1024    # v7x: 64 MiB physical VMEM


def _pick_tm(B, cap):
    # Full batch when small (block == full dim is exempt from the 8-rule),
    # otherwise the cap (a multiple of 8); ragged last M block is clipped.
    return B if B <= cap else cap


def _pick_tn(C, cap):
    if C <= cap:
        return C                               # full dim: lane-dense store, exempt
    for t in range(cap, 127, -128):            # prefer an exact 128-multiple divisor
        if C % t == 0:
            return t
    return cap                                 # else accept one ragged (clipped) last block


def _pick_tk(F, cap):
    # tk must divide F (or equal F) so no garbage is accumulated over a ragged K tile.
    if F <= cap:
        return F
    for t in (2048, 1024, 512, 256, 128):
        if t <= cap and F % t == 0:
            return t
    return F                                   # last resort: single K step (block == full dim)


def _split_for_megacore(B, C, tm, tn):
    """Ensure >=2 blocks along a parallel axis so v7x's 2nd TensorCore has work.

    Free on single-TC v5e/v6e (grid is a sequential loop there anyway)."""
    if pl.cdiv(B, tm) * pl.cdiv(C, tn) > 1:
        return tm, tn
    if C >= 256:
        return tm, max(128, (C // 2) // 128 * 128)
    if B >= 16:
        return max(8, (B // 2) // 8 * 8), tn
    return tm, tn


# -----------------------------------------------------------------------------
# Parameter prep (do ONCE, reuse across inference calls — no per-call casts).
# -----------------------------------------------------------------------------
def prepare_params(weight, bias, scales, compute_dtype=jnp.bfloat16):
    """Fold per-class scales into W/b and optionally cast W to a compute dtype.

    bf16 weights halve the W HBM read (the roofline term for small/medium B);
    accumulation stays f32 inside the kernel via preferred_element_type."""
    C, _ = weight.shape
    w = weight * scales[:, None]
    if compute_dtype is not None:
        w = w.astype(compute_dtype)
    b = (bias * scales).reshape(1, C).astype(jnp.float32)
    return w, b


def dot_product_classifier_prepped(x, w_prepped, b_prepped, *, tm=None, tn=None, tk=None):
    """x: [B, F]; w_prepped: [C, F] (native PyTorch layout, scales folded);
    b_prepped: [1, C] f32 (scales folded).  Returns (logits[B, C], None)."""
    B, F = x.shape
    C, Fw = w_prepped.shape
    assert Fw == F, "weight must be [num_classes, feat_dim]"
    out_dtype = x.dtype

    if x.dtype != w_prepped.dtype:             # tiny (B*F) cast; W is never cast here
        x = x.astype(w_prepped.dtype)

    tm_cap, tn_cap, tk_cap, vmem_limit = _hw_budget()
    tm = _pick_tm(B, tm_cap) if tm is None else min(tm, B)
    tn = _pick_tn(C, tn_cap) if tn is None else min(tn, C)
    tk = _pick_tk(F, tk_cap) if tk is None else min(tk, F)
    # Guard against ragged-K accumulation corruption.
    assert tk == F or F % tk == 0, "K tile must divide feat_dim (or equal it)"

    # v7x megacore: guarantee >=2 blocks along a parallel axis when possible.
    tm, tn = _split_for_megacore(B, C, tm, tn)
    # If the grid is still one block and the W tile is large, split K so the
    # second half of the W DMA overlaps the matmul on the first half.
    if (pl.cdiv(B, tm) * pl.cdiv(C, tn) == 1 and tk == F
            and F >= 1024 and F % 256 == 0):
        tk = F // 2

    nm, nn, nk = pl.cdiv(B, tm), pl.cdiv(C, tn), pl.cdiv(F, tk)
    grid = (nm, nn, nk)

    if nk == 1:
        kernel, scratch = _single_step_kernel, []
    elif jnp.dtype(out_dtype) == jnp.float32:
        kernel, scratch = _multi_step_kernel_f32, []
    else:
        kernel, scratch = _multi_step_kernel_acc, [pltpu.VMEM((tm, tn), jnp.float32)]

    x_bytes = jnp.dtype(x.dtype).itemsize
    w_bytes = jnp.dtype(w_prepped.dtype).itemsize
    o_bytes = jnp.dtype(out_dtype).itemsize
    cost = pl.CostEstimate(
        flops=2 * B * F * C,
        transcendentals=0,
        bytes_accessed=(B * F * x_bytes * nn       # x re-read per N block
                        + C * F * w_bytes * nm     # W re-read per M block
                        + C * 4 * nm               # bias row
                        + B * C * o_bytes),
    )

    out = pl.pallas_call(
        kernel,
        out_shape=jax.ShapeDtypeStruct((B, C), out_dtype),
        grid_spec=pltpu.PrefetchScalarGridSpec(
            num_scalar_prefetch=0,
            grid=grid,
            in_specs=[
                pl.BlockSpec((tm, tk), lambda i, j, k: (i, k)),   # x tile [tm, tk]
                pl.BlockSpec((tn, tk), lambda i, j, k: (j, k)),   # W tile [tn, tk] (native [C,F])
                pl.BlockSpec((1, tn), lambda i, j, k: (0, j)),    # bias row (scales folded)
            ],
            out_specs=pl.BlockSpec((tm, tn), lambda i, j, k: (i, j)),
            scratch_shapes=scratch,
        ),
        compiler_params=pltpu.CompilerParams(
            dimension_semantics=("parallel", "parallel", "arbitrary"),
            vmem_limit_bytes=vmem_limit,
        ),
        cost_estimate=cost,
    )(x, w_prepped, b_prepped)
    return out, None  # matches PyTorch `return (x, None)`


def dot_product_classifier(x, weight, bias, scales, pos_grad=None, *,
                           compute_dtype=None, tm=None, tn=None, tk=None):
    """Eval-path forward of DotProduct_Classifier: ((x @ W.T + b) * scales, None).

    For repeated inference, call prepare_params() once and reuse
    dot_product_classifier_prepped() so weights are not re-scaled / re-cast
    per call.  pos_grad is accepted for API parity but unused in eval."""
    # TODO(synk): training-time margin branch (x = fc(x) + log(margin)) not
    # implemented; module defaults to margin_cls=False / eval mode.
    del pos_grad
    w_p, b_p = prepare_params(weight, bias, scales, compute_dtype)
    return dot_product_classifier_prepped(x, w_p, b_p, tm=tm, tn=tn, tk=tk)


if __name__ == "__main__":
    # Small shapes consistent with the module: batch=8, feat_dim=256, classes=128.
    B, FEAT, NUM_CLASSES = 8, 256, 128

    key = jax.random.PRNGKey(0)
    kx, kw, kb, ks = jax.random.split(key, 4)

    x = jax.random.normal(kx, (B, FEAT), dtype=jnp.float32)

    # Deterministic synthetic parameters (nn.Linear(feat_dim, num_classes)).
    bound = 1.0 / (FEAT ** 0.5)
    weight = jax.random.uniform(
        kw, (NUM_CLASSES, FEAT), minval=-bound, maxval=bound, dtype=jnp.float32)
    bias = jax.random.uniform(
        kb, (NUM_CLASSES,), minval=-bound, maxval=bound, dtype=jnp.float32)
    # Parameter(torch.ones(C)) at init; perturb slightly so the fold is exercised.
    scales = 1.0 + 0.01 * jax.random.normal(ks, (NUM_CLASSES,), dtype=jnp.float32)

    pos_grad = jnp.ones((NUM_CLASSES,), dtype=jnp.float32)  # unused in eval path

    y_ref = (x @ weight.T + bias) * scales

    # f32 path (exact reference check).
    y32, aux = dot_product_classifier(x, weight, bias, scales, pos_grad,
                                      compute_dtype=None)
    y32 = jax.block_until_ready(y32)
    assert y32.shape == (B, NUM_CLASSES) and aux is None
    assert jnp.allclose(y32, y_ref, atol=1e-4, rtol=1e-4)

    # Recommended inference path: prep bf16 params ONCE, reuse across calls.
    w_bf16, b_f32 = prepare_params(weight, bias, scales, jnp.bfloat16)
    y16, _ = dot_product_classifier_prepped(x, w_bf16, b_f32)
    y16 = jax.block_until_ready(y16)
    assert y16.shape == (B, NUM_CLASSES) and y16.dtype == x.dtype
    assert jnp.allclose(y16, y_ref, atol=3e-2, rtol=0)

    print("KERNEL_OK")
</pallas_src>

<mosaic_0001>
module attributes {stable_mosaic.version = 11 : i64} {
  func.func @_single_step_kernel(%arg0: i32, %arg1: i32, %arg2: i32, %arg3: memref<8x256xf32, #tpu.memory_space<vmem>>, %arg4: memref<128x256xf32, #tpu.memory_space<vmem>>, %arg5: memref<1x128xf32, #tpu.memory_space<vmem>>, %arg6: memref<8x128xf32, #tpu.memory_space<vmem>>) attributes {dimension_semantics = [#tpu.dimension_semantics<parallel>, #tpu.dimension_semantics<parallel>, #tpu.dimension_semantics<arbitrary>], iteration_bounds = array<i64: 1, 1, 1>, scalar_prefetch = 0 : i64, scratch_operands = 0 : i64, tpu.core_type = #tpu.core_type<tc>, window_params = [{transform_indices = @transform_0, window_bounds = array<i64: 8, 256>}, {transform_indices = @transform_1, window_bounds = array<i64: 128, 256>}, {transform_indices = @transform_2, window_bounds = array<i64: 1, 128>}, {transform_indices = @transform_3, window_bounds = array<i64: 8, 128>}]} {
    %c0 = arith.constant 0 : index
    %c0_0 = arith.constant 0 : index
    %0 = vector.load %arg3[%c0, %c0_0] : memref<8x256xf32, #tpu.memory_space<vmem>>, vector<8x256xf32>
    %c0_1 = arith.constant 0 : index
    %c0_2 = arith.constant 0 : index
    %1 = vector.load %arg4[%c0_1, %c0_2] : memref<128x256xf32, #tpu.memory_space<vmem>>, vector<128x256xf32>
    %cst = arith.constant dense<0.000000e+00> : vector<8x128xf32>
    %2 = tpu.matmul %0, %1, %cst {dimension_numbers = #tpu.dot_dimension_numbers<[1], [1], [0], [0], [0, 0, 1, 0], [], []>} : vector<8x256xf32>, vector<128x256xf32>, vector<8x128xf32> -> vector<8x128xf32>
    %c0_3 = arith.constant 0 : index
    %c0_4 = arith.constant 0 : index
    %3 = vector.load %arg5[%c0_3, %c0_4] : memref<1x128xf32, #tpu.memory_space<vmem>>, vector<1x128xf32>
    %4 = vector.broadcast %3 : vector<1x128xf32> to vector<8x128xf32>
    %5 = arith.addf %2, %4 : vector<8x128xf32>
    %c0_5 = arith.constant 0 : index
    %c0_6 = arith.constant 0 : index
    %6 = vector.load %arg6[%c0_5, %c0_6] : memref<8x128xf32, #tpu.memory_space<vmem>>, vector<8x128xf32>
    tpu.vector_store %arg6[%c0_5, %c0_6], %5 {strides = array<i32>} : memref<8x128xf32, #tpu.memory_space<vmem>>, vector<8x128xf32>,
    return
  }
  func.func @transform_0(%arg0: i32, %arg1: i32, %arg2: i32) -> (i32, i32) {
    %c0_i32 = arith.constant 0 : i32
    return %arg0, %arg2 : i32, i32
  }
  func.func @transform_1(%arg0: i32, %arg1: i32, %arg2: i32) -> (i32, i32) {
    %c0_i32 = arith.constant 0 : i32
    return %arg1, %arg2 : i32, i32
  }
  func.func @transform_2(%arg0: i32, %arg1: i32, %arg2: i32) -> (i32, i32) {
    %c0_i32 = arith.constant 0 : i32
    %c0_i32_0 = arith.constant 0 : i32
    return %c0_i32, %arg1 : i32, i32
  }
  func.func @transform_3(%arg0: i32, %arg1: i32, %arg2: i32) -> (i32, i32) {
    %c0_i32 = arith.constant 0 : i32
    return %arg0, %arg1 : i32, i32
  }
}

</mosaic_0001>

<llo_original>
// kernel: tpu_custom_call.1
$region0: #{tpu_custom_call.1}
  #allocation0 [shape = 'u32[]', space=smem, size = 0x4, offset = 0x4, fixed_abs, tag = 'smem constant byte address 0x4 - core index']
  #allocation1 [shape = 'u32[144,128]{1,0:T(1,128)}', space=vmem, size = 0x12000, scoped, tag = 'internal scratch']
  %s0 = inlined_call_operand.hbm [shape: f32[8,256], index: 0, kind: input, shape index: {}]
  %s1 = inlined_call_operand.hbm [shape: f32[128,256], index: 1, kind: input, shape index: {}]
  %s2 = inlined_call_operand.vmem [shape: f32[1,128], index: 2, kind: input, shape index: {}]
  %s3 = inlined_call_operand.hbm [shape: f32[8,128], index: 3, kind: output, shape index: {}]
  %s4 = sld [smem:[#allocation0]]
  $region30: #{tpu_custom_call.1} parent=0
    _
  %s6 = ssub.s32 1, %s4
  %s7 = scalar_select 0, %s6, %s4
  $region1: #{tpu_custom_call.1} parent=0
    #allocation2 [shape = 'u8[8192]{0}', space=vmem, size = 0x2000, scoped, tag = 'input window, operand 0, single buffered']
    #allocation3 [shape = 's32[1]{0}', space=sflag, size = 0x4, scoped, tag = 'scoped memory for tpu_custom_call.1']
    #allocation4 [shape = 's32[1]{0}', space=sflag, size = 0x4, scoped, tag = 'scoped memory for tpu_custom_call.1']
    #allocation5 [shape = 'u8[131072]{0}', space=vmem, size = 0x20000, scoped, tag = 'input window, operand 1, single buffered']
    #allocation6 [shape = 's32[1]{0}', space=sflag, size = 0x4, scoped, tag = 'scoped memory for tpu_custom_call.1']
    #allocation7 [shape = 'u8[4096]{0}', space=vmem, size = 0x1000, scoped, tag = 'output window, operand 0, single buffered']
    %8 = vsyncpa [#allocation3], 0
    %9 = vsyncpa [#allocation6], 0
    %10 = vsyncpa [#allocation4], 0
    // Predicated region
    $region2: #{tpu_custom_call.1} parent=1 // pred_check
      _
    $region3: #{tpu_custom_call.1} parent=1 // pred_check_branch
      %12 = sbr.rel (0) target = $region5
    $region4: #{tpu_custom_call.1} parent=1 // pred_region
      %s14 = ssub.s32 256, 256
      %15 = vsyncadd [#allocation3], %s14
      %s17 = sshll.u32 [#allocation2], 4
      %s18 = int_to_ptr.vmem [resolvable:$true] %s17
      %20 = dma.hbm_to_vmem [thread:$0]  %s0, 256, %s18, [#allocation3]
    $region5: #{tpu_custom_call.1} parent=1 // pred_fallthru
      _
    // Predicated region
    $region6: #{tpu_custom_call.1} parent=1 // pred_check
      _
    $region7: #{tpu_custom_call.1} parent=1 // pred_check_branch
      %22 = sbr.rel (0) target = $region9
    $region8: #{tpu_custom_call.1} parent=1 // pred_region
      %s24 = ssub.s32 4096, 4096
      %25 = vsyncadd [#allocation6], %s24
      %s26 = sshll.u32 [#allocation5], 4
      %s27 = int_to_ptr.vmem [resolvable:$true] %s26
      %32 = dma.hbm_to_vmem [thread:$0]  %s1, 4096, %s27, [#allocation6], 256, 256, 16
    $region9: #{tpu_custom_call.1} parent=1 // pred_fallthru
      _
    // Predicated region
    $region10: #{tpu_custom_call.1} parent=1 // pred_check
      _
    $region11: #{tpu_custom_call.1} parent=1 // pred_check_branch
      %34 = sbr.rel (0) target = $region13
    $region12: #{tpu_custom_call.1} parent=1 // pred_region
      _
    $region13: #{tpu_custom_call.1} parent=1 // pred_fallthru
      _
    // Predicated region
    $region14: #{tpu_custom_call.1} parent=1 // pred_check
      _
    $region15: #{tpu_custom_call.1} parent=1 // pred_check_branch
      %36 = sbr.rel (0) target = $region17
    $region16: #{tpu_custom_call.1} parent=1 // pred_region
      %37 = dma.done [#allocation3], 256
    $region17: #{tpu_custom_call.1} parent=1 // pred_fallthru
      _
    // Predicated region
    $region18: #{tpu_custom_call.1} parent=1 // pred_check
      _
    $region19: #{tpu_custom_call.1} parent=1 // pred_check_branch
      %39 = sbr.rel (0) target = $region21
    $region20: #{tpu_custom_call.1} parent=1 // pred_region
      %40 = dma.done [#allocation6], 4096
    $region21: #{tpu_custom_call.1} parent=1 // pred_fallthru
      _
    %v41 = vld [vmem:[#allocation2] sm:$0xff]
    %v42 = vld [vmem:[#allocation2 + $0x8] sm:$0xff]
    %v43 = vld [vmem:[#allocation5] sm:$0xff]
    %v44 = vld [vmem:[#allocation5 + $0x8] sm:$0xff]
    %v45 = vld [vmem:[#allocation5 + $0x10] sm:$0xff]
    %v46 = vld [vmem:[#allocation5 + $0x18] sm:$0xff]
    %v47 = vld [vmem:[#allocation5 + $0x20] sm:$0xff]
    %v48 = vld [vmem:[#allocation5 + $0x28] sm:$0xff]
    %v49 = vld [vmem:[#allocation5 + $0x30] sm:$0xff]
    %v50 = vld [vmem:[#allocation5 + $0x38] sm:$0xff]
    %v51 = vld [vmem:[#allocation5 + $0x40] sm:$0xff]
    %v52 = vld [vmem:[#allocation5 + $0x48] sm:$0xff]
    %v53 = vld [vmem:[#allocation5 + $0x50] sm:$0xff]
    %v54 = vld [vmem:[#allocation5 + $0x58] sm:$0xff]
    %v55 = vld [vmem:[#allocation5 + $0x60] sm:$0xff]
    %v56 = vld [vmem:[#allocation5 + $0x68] sm:$0xff]
    %v57 = vld [vmem:[#allocation5 + $0x70] sm:$0xff]
    %v58 = vld [vmem:[#allocation5 + $0x78] sm:$0xff]
    %v59 = vld [vmem:[#allocation5 + $0x80] sm:$0xff]
    %v60 = vld [vmem:[#allocation5 + $0x88] sm:$0xff]
    %v61 = vld [vmem:[#allocation5 + $0x90] sm:$0xff]
    %v62 = vld [vmem:[#allocation5 + $0x98] sm:$0xff]
    %v63 = vld [vmem:[#allocation5 + $0xa0] sm:$0xff]
    %v64 = vld [vmem:[#allocation5 + $0xa8] sm:$0xff]
    %v65 = vld [vmem:[#allocation5 + $0xb0] sm:$0xff]
    %v66 = vld [vmem:[#allocation5 + $0xb8] sm:$0xff]
    %v67 = vld [vmem:[#allocation5 + $0xc0] sm:$0xff]
    %v68 = vld [vmem:[#allocation5 + $0xc8] sm:$0xff]
    %v69 = vld [vmem:[#allocation5 + $0xd0] sm:$0xff]
    %v70 = vld [vmem:[#allocation5 + $0xd8] sm:$0xff]
    %v71 = vld [vmem:[#allocation5 + $0xe0] sm:$0xff]
    %v72 = vld [vmem:[#allocation5 + $0xe8] sm:$0xff]
    %v73 = vld [vmem:[#allocation5 + $0xf0] sm:$0xff]
    %v74 = vld [vmem:[#allocation5 + $0xf8] sm:$0xff]
    %v75 = vld [vmem:[%s2] sm:$0x1]
    %v77 = vlaneseq
    %v78 = vshrl.u32 %v77, 7
    %v79 = vsub.s32 0, %v78
    %v80 = vrot.slane %v75, %v79
    %82 = vmatprep.subr.mxu0 %v74
    %83 = vmatpush1.xpose.msra.mxu0 %v73
    %84 = vmatprep.subr.mxu0 %v72
    %85 = vmatpush1.xpose.msra.mxu0 %v71
    %86 = vmatprep.subr.mxu0 %v70
    %87 = vmatpush1.xpose.msra.mxu0 %v69
    %88 = vmatprep.subr.mxu0 %v68
    %89 = vmatpush1.xpose.msra.mxu0 %v67
    %90 = vmatprep.subr.mxu0 %v66
    %91 = vmatpush1.xpose.msra.mxu0 %v65
    %92 = vmatprep.subr.mxu0 %v64
    %93 = vmatpush1.xpose.msra.mxu0 %v63
    %94 = vmatprep.subr.mxu0 %v62
    %95 = vmatpush1.xpose.msra.mxu0 %v61
    %96 = vmatprep.subr.mxu0 %v60
    %97 = vmatpush1.xpose.msra.mxu0 %v59
    %98 = vmatprep.subr.mxu0 %v58
    %99 = vmatpush1.xpose.msra.mxu0 %v57
    %100 = vmatprep.subr.mxu0 %v56
    %101 = vmatpush1.xpose.msra.mxu0 %v55
    %102 = vmatprep.subr.mxu0 %v54
    %103 = vmatpush1.xpose.msra.mxu0 %v53
    %104 = vmatprep.subr.mxu0 %v52
    %105 = vmatpush1.xpose.msra.mxu0 %v51
    %106 = vmatprep.subr.mxu0 %v50
    %107 = vmatpush1.xpose.msra.mxu0 %v49
    %108 = vmatprep.subr.mxu0 %v48
    %109 = vmatpush1.xpose.msra.mxu0 %v47
    %110 = vmatprep.subr.mxu0 %v46
    %111 = vmatpush1.xpose.msra.mxu0 %v45
    %112 = vmatprep.subr.mxu0 %v44
    %113 = vmatpush1.xpose.msra.mxu0 %v43
    %114 = vmatprep.subr.mxu0 0.0
    %115 = vmatpush2.xpose.msra.mxu0 0.0
    %116 = vmatprep.subr.mxu0 0.0
    %117 = vmatpush2.xpose.msra.mxu0 0.0
    %118 = vmatprep.subr.mxu0 0.0
    %119 = vmatpush2.xpose.msra.mxu0 0.0
    %120 = vmatprep.subr.mxu0 0.0
    %121 = vmatpush2.xpose.msra.mxu0 0.0
    %122 = vmatprep.subr.mxu0 0.0
    %123 = vmatpush2.xpose.msra.mxu0 0.0
    %124 = vmatprep.subr.mxu0 0.0
    %125 = vmatpush2.xpose.msra.mxu0 0.0
    %126 = vmatprep.subr.mxu0 0.0
    %127 = vmatpush2.xpose.msra.mxu0 0.0
    %128 = vmatprep.subr.mxu0 0.0
    %129 = vmatpush2.xpose.msra.mxu0 0.0
    %130 = vmatprep.subr.mxu0 0.0
    %131 = vmatpush2.xpose.msra.mxu0 0.0
    %132 = vmatprep.subr.mxu0 0.0
    %133 = vmatpush2.xpose.msra.mxu0 0.0
    %134 = vmatprep.subr.mxu0 0.0
    %135 = vmatpush2.xpose.msra.mxu0 0.0
    %136 = vmatprep.subr.mxu0 0.0
    %137 = vmatpush2.xpose.msra.mxu0 0.0
    %138 = vmatprep.subr.mxu0 0.0
    %139 = vmatpush2.xpose.msra.mxu0 0.0
    %140 = vmatprep.subr.mxu0 0.0
    %141 = vmatpush2.xpose.msra.mxu0 0.0
    %142 = vmatprep.subr.mxu0 0.0
    %143 = vmatpush2.xpose.msra.mxu0 0.0
    %144 = vmatprep.subr.mxu0 0.0
    %145 = vmatpush2.xpose.msra.mxu0 0.0
    %146 = vmatprep.mubr.f32.mxu0 %v42
    %147 = vmatmul.mubr.f32.gmra.mxu0 %v41
    %v148 = vpop.f32.mrf.mxu0
    %v149 = vadd.f32 %v80, %v148
    %v150 = vpop.f32.mrf.mxu0
    %151 = vdwg.mxu0
    %152 = vst [vmem:[#allocation7] sm:$0xff] %v149
    // Predicated region
    $region22: #{tpu_custom_call.1} parent=1 // pred_check
      _
    $region23: #{tpu_custom_call.1} parent=1 // pred_check_branch
      %154 = sbr.rel (0) target = $region25
    $region24: #{tpu_custom_call.1} parent=1 // pred_region
      %s156 = ssub.s32 128, 128
      %157 = vsyncadd [#allocation4], %s156
      %s159 = sshll.u32 [#allocation7], 4
      %s160 = int_to_ptr.vmem [resolvable:$true] %s159
      %162 = dma.vmem_to_hbm [thread:$0]  %s160, 128, %s3, [#allocation4]
    $region25: #{tpu_custom_call.1} parent=1 // pred_fallthru
      _
    // Predicated region
    $region26: #{tpu_custom_call.1} parent=1 // pred_check
      _
    $region27: #{tpu_custom_call.1} parent=1 // pred_check_branch
      %164 = sbr.rel (0) target = $region29
    $region28: #{tpu_custom_call.1} parent=1 // pred_region
      %165 = dma.done [#allocation4], 128
    $region29: #{tpu_custom_call.1} parent=1 // pred_fallthru
      _
    %166 = vsyncpa [#allocation3], 1
    %167 = vsyncpa [#allocation6], 1
    %168 = vsyncpa [#allocation4], 1

</llo_original>
